<compile_context>
chip_gen: v5e
topology: v5e:2x2
jax: 0.10.0
libtpu: 0.0.40
codegen_flags: <defaults>
</compile_context>

<pallas_src>
import math

import jax
import jax.numpy as jnp
from jax.experimental import pallas as pl
from jax.experimental.pallas import tpu as pltpu  # noqa: F401  (TPU backend)

# Problem sizes (reconciled from the reference forward).
M = 8     # number of query rows      (q.reshape(8, ...))
N = 2     # number of key/value rows  (k has 2 rows)
D = 36    # head dim for q/k          (q.reshape(8, 36))
DV = 56   # value dim                 (v.reshape(..., 56))

SCALE = 1.0 / math.sqrt(D)  # reference divides by sqrt(k.shape[1]); multiply by inverse


def _sdpa_kernel(q_ref, v_ref, o_ref):
    # Whole problem is one VMEM tile; VPU/XLU/EUP only, no MXU, no transpose.
    q = q_ref[...]                       # (8, 36) f32
    k0 = q[0:1, :]                       # k == first two rows of q
    k1 = q[1:2, :]

    # Raw scores (scale folded into the sigmoid argument below).
    s0 = jnp.sum(q * k0, axis=-1, keepdims=True)          # (8, 1)
    s1 = jnp.sum(q * k1, axis=-1, keepdims=True)          # (8, 1)

    # Exact 2-key softmax: a0 = sigmoid((s0 - s1) * SCALE), a1 = 1 - a0.
    # Single transcendental (exp); full-precision divide -> no approx error.
    a0 = 1.0 / (1.0 + jnp.exp((s1 - s0) * SCALE))          # (8, 1)
    a1 = 1.0 - a0

    v0 = v_ref[0:1, :]                   # (1, 56)
    v1 = v_ref[1:2, :]

    # out = attn @ v, expanded as two broadcast-FMAs.
    o_ref[...] = a0 * v0 + a1 * v1       # (8, 56)


def sdpa_pallas(q, v):
    # No grid: everything fits in one VMEM tile; full-array block specs.
    return pl.pallas_call(
        _sdpa_kernel,
        out_shape=jax.ShapeDtypeStruct((M, DV), jnp.float32),
        in_specs=[
            pl.BlockSpec((M, D), lambda: (0, 0)),
            pl.BlockSpec((N, DV), lambda: (0, 0)),
        ],
        out_specs=pl.BlockSpec((M, DV), lambda: (0, 0)),
    )(q, v)


@jax.jit
def model_forward(x1):
    """Mirrors Model.forward: derive q, k, v views from the single input buffer."""
    flat = x1.reshape(-1).astype(jnp.float32)
    q = flat[: M * D].reshape(M, D)      # q = x1.reshape(8, 36)
    v = flat[: N * DV].reshape(N, DV)    # v ~ x1.reshape(..., 56)  (reconciled)
    # k = flat[: N * D].reshape(N, D) == q[:2]; carved inside the kernel for free.
    return sdpa_pallas(q, v)             # (8, 56)


def _reference(x1):
    flat = x1.reshape(-1)
    q = flat[: M * D].reshape(M, D)
    k = flat[: N * D].reshape(N, D)
    v = flat[: N * DV].reshape(N, DV)
    scores = (q @ k.T) / math.sqrt(k.shape[1])
    w = jax.nn.softmax(scores, axis=-1)
    return w @ v


if __name__ == "__main__":
    key = jax.random.PRNGKey(0)
    k_in, k_pk, k_pv = jax.random.split(key, 3)

    # Small input consistent with the forward's reshapes (288 elements).
    x1 = jax.random.normal(k_in, (M, D), dtype=jnp.float32)

    # Deterministic (unused) parameters, matching the module's __init__ intent at
    # small synthetic sizes; the forward never reads them.
    _param_k = jax.random.normal(k_pk, (4, 2, 3), dtype=jnp.float32)
    _param_v = jax.random.normal(k_pv, (8, 7, 4), dtype=jnp.float32)

    out = jax.block_until_ready(model_forward(x1))
    ref = _reference(x1)

    assert out.shape == (M, DV)
    # Exact softmax (no approx reciprocal) -> tight tolerance.
    assert jnp.allclose(out, ref, atol=1e-4, rtol=1e-4)

    print("KERNEL_OK")
</pallas_src>

<mosaic_0001>
module attributes {stable_mosaic.version = 11 : i64} {
  func.func @_sdpa_kernel(%arg0: memref<8x36xf32, #tpu.memory_space<vmem>>, %arg1: memref<2x56xf32, #tpu.memory_space<vmem>>, %arg2: memref<8x56xf32, #tpu.memory_space<vmem>>) attributes {dimension_semantics = [], scalar_prefetch = 0 : i64, scratch_operands = 0 : i64, tpu.core_type = #tpu.core_type<tc>} {
    %c0 = arith.constant 0 : index
    %c0_0 = arith.constant 0 : index
    %0 = vector.load %arg0[%c0, %c0_0] : memref<8x36xf32, #tpu.memory_space<vmem>>, vector<8x36xf32>
    %1 = vector.extract_strided_slice %0 {offsets = [0, 0], sizes = [1, 36], strides = [1, 1]} : vector<8x36xf32> to vector<1x36xf32>
    %2 = vector.extract_strided_slice %0 {offsets = [1, 0], sizes = [1, 36], strides = [1, 1]} : vector<8x36xf32> to vector<1x36xf32>
    %3 = vector.broadcast %1 : vector<1x36xf32> to vector<8x36xf32>
    %4 = arith.mulf %0, %3 : vector<8x36xf32>
    %cst = arith.constant dense<0.000000e+00> : vector<8xf32>
    %5 = vector.multi_reduction <add>, %4, %cst [1] : vector<8x36xf32> to vector<8xf32>
    %6 = vector.shape_cast %5 : vector<8xf32> to vector<8x1xf32>
    %7 = vector.broadcast %2 : vector<1x36xf32> to vector<8x36xf32>
    %8 = arith.mulf %0, %7 : vector<8x36xf32>
    %cst_1 = arith.constant dense<0.000000e+00> : vector<8xf32>
    %9 = vector.multi_reduction <add>, %8, %cst_1 [1] : vector<8x36xf32> to vector<8xf32>
    %10 = vector.shape_cast %9 : vector<8xf32> to vector<8x1xf32>
    %11 = arith.subf %10, %6 : vector<8x1xf32>
    %cst_2 = arith.constant 0.166666672 : f32
    %12 = vector.broadcast %cst_2 : f32 to vector<8x1xf32>
    %13 = arith.mulf %11, %12 : vector<8x1xf32>
    %14 = math.exp %13 : vector<8x1xf32>
    %cst_3 = arith.constant 1.000000e+00 : f32
    %15 = vector.broadcast %cst_3 : f32 to vector<8x1xf32>
    %16 = arith.addf %15, %14 : vector<8x1xf32>
    %cst_4 = arith.constant 1.000000e+00 : f32
    %17 = vector.broadcast %cst_4 : f32 to vector<8x1xf32>
    %18 = arith.divf %17, %16 : vector<8x1xf32>
    %cst_5 = arith.constant 1.000000e+00 : f32
    %19 = vector.broadcast %cst_5 : f32 to vector<8x1xf32>
    %20 = arith.subf %19, %18 : vector<8x1xf32>
    %c0_6 = arith.constant 0 : index
    %c0_7 = arith.constant 0 : index
    %21 = vector.load %arg1[%c0_6, %c0_7] : memref<2x56xf32, #tpu.memory_space<vmem>>, vector<1x56xf32>
    %c1 = arith.constant 1 : index
    %c0_8 = arith.constant 0 : index
    %22 = vector.load %arg1[%c1, %c0_8] : memref<2x56xf32, #tpu.memory_space<vmem>>, vector<1x56xf32>
    %23 = vector.broadcast %18 : vector<8x1xf32> to vector<8x56xf32>
    %24 = vector.broadcast %21 : vector<1x56xf32> to vector<8x56xf32>
    %25 = arith.mulf %23, %24 : vector<8x56xf32>
    %26 = vector.broadcast %20 : vector<8x1xf32> to vector<8x56xf32>
    %27 = vector.broadcast %22 : vector<1x56xf32> to vector<8x56xf32>
    %28 = arith.mulf %26, %27 : vector<8x56xf32>
    %29 = arith.addf %25, %28 : vector<8x56xf32>
    %c0_9 = arith.constant 0 : index
    %c0_10 = arith.constant 0 : index
    %30 = vector.load %arg2[%c0_9, %c0_10] : memref<8x56xf32, #tpu.memory_space<vmem>>, vector<8x56xf32>
    tpu.vector_store %arg2[%c0_9, %c0_10], %29 {strides = array<i32>} : memref<8x56xf32, #tpu.memory_space<vmem>>, vector<8x56xf32>,
    return
  }
}

</mosaic_0001>

<llo_original>
// kernel: model_forward.1
$region0: #{model_forward.1}
  #allocation0 [shape = 'u32[]', space=smem, size = 0x4, offset = 0x4, fixed_abs, tag = 'smem constant byte address 0x4 - core index']
  #allocation1 [shape = 'u32[72,128]{1,0:T(1,128)}', space=vmem, size = 0x9000, scoped, tag = 'internal scratch']
  %s0 = inlined_call_operand.vmem [shape: f32[8,36], index: 0, kind: input, shape index: {}]
  %s1 = inlined_call_operand.vmem [shape: f32[2,56], index: 1, kind: input, shape index: {}]
  %s2 = inlined_call_operand.hbm [shape: f32[8,56], index: 2, kind: output, shape index: {}]
  %s3 = sld [smem:[#allocation0]]
  $region18: #{model_forward.1} parent=0
    _
  %s5 = ssub.s32 1, %s3
  %s6 = scalar_select 0, %s5, %s3
  $region1: #{model_forward.1} parent=0
    #allocation2 [shape = 'u8[4096]{0}', space=vmem, size = 0x1000, scoped, tag = 'output window, operand 0, single buffered']
    #allocation3 [shape = 's32[1]{0}', space=sflag, size = 0x4, scoped, tag = 'scoped memory for model_forward.1']
    %7 = vsyncpa [#allocation3], 0
    // Predicated region
    $region2: #{model_forward.1} parent=1 // pred_check
      _
    $region3: #{model_forward.1} parent=1 // pred_check_branch
      %9 = sbr.rel (0) target = $region5
    $region4: #{model_forward.1} parent=1 // pred_region
      _
    $region5: #{model_forward.1} parent=1 // pred_fallthru
      _
    // Predicated region
    $region6: #{model_forward.1} parent=1 // pred_check
      _
    $region7: #{model_forward.1} parent=1 // pred_check_branch
      %11 = sbr.rel (0) target = $region9
    $region8: #{model_forward.1} parent=1 // pred_region
      _
    $region9: #{model_forward.1} parent=1 // pred_fallthru
      _
    %v12 = vld [vmem:[%s0] sm:$0xff]
    %v13 = vperm.slane %v12, 0
    %v14 = vmul.f32 %v12, %v13
    %vm15 = vcmask 293888
    %v16 = vsel %vm15, %v14, 0.0
    %17 = vadd.xlane.f32.xlu0 %v16
    %v18 = vpop.xlane.xlu0 %17
    %v19 = vperm.slane %v12, 1
    %v20 = vmul.f32 %v12, %v19
    %v21 = vsel %vm15, %v20, 0.0
    %22 = vadd.xlane.f32.xlu0 %v21
    %v23 = vpop.xlane.xlu0 %22
    %v24 = vsub.f32 %v23, %v18
    %v25 = vmul.f32 %v24, 0.16666667
    %v26 = vmul.f32 %v25, 1.442695
    %v27 = vpow.pop %v26
    %v28 = vadd.f32 %v27, 1.0
    %v29 = vrcp.pop %v28
    %v30 = vmul.f32 %v28, %v29
    %v31 = vsub.f32 1.0, %v30
    %v32 = vmul.f32 %v29, %v31
    %v33 = vadd.f32 %v29, %v32
    %vm34 = vweird.f32 %v28
    %vm35 = vweird.f32 %v29
    %vm36 = vmor %vm34, %vm35
    %v37 = vsel %vm36, %v29, %v33
    %v38 = vand.u32 2147483647, %v28
    %vm39 = vcmp.eq.f32.partialorder %v38, 8.507059e+37
    %v40 = vand.u32 %v28, 2147483648
    %v41 = vor.u32 1.1754944e-38, %v40
    %v42 = vsel %vm39, %v41, %v37
    %v43 = vmul.f32 1.0, %v42
    %v44 = vsub.f32 1.0, %v43
    %v45 = vld [vmem:[%s1] sm:$0x1]
    %v46 = vld [vmem:[%s1 + $0x1] sm:$0x1]
    %v47 = vperm.slane %v45, 0
    %v48 = vmul.f32 %v43, %v47
    %v49 = vperm.slane %v46, 0
    %v50 = vmul.f32 %v44, %v49
    %v51 = vadd.f32 %v48, %v50
    %vm52 = vcmask 457728
    %53 = vst.msk [vmem:[#allocation2] sm:$0xff] %vm52, %v51
    // Predicated region
    $region10: #{model_forward.1} parent=1 // pred_check
      _
    $region11: #{model_forward.1} parent=1 // pred_check_branch
      %55 = sbr.rel (0) target = $region13
    $region12: #{model_forward.1} parent=1 // pred_region
      %57 = vsyncadd [#allocation3], 0
      %s59 = sshll.u32 [#allocation2], 4
      %s60 = int_to_ptr.vmem [resolvable:$true] %s59
      %s61 = sshll.u32 %s2, 4
      %s62 = int_to_ptr.hbm [resolvable:$true] %s61
      %64 = dma.vmem_to_hbm [thread:$0]  %s60, 128, %s62, [#allocation3]
    $region13: #{model_forward.1} parent=1 // pred_fallthru
      _
    // Predicated region
    $region14: #{model_forward.1} parent=1 // pred_check
      _
    $region15: #{model_forward.1} parent=1 // pred_check_branch
      %66 = sbr.rel (0) target = $region17
    $region16: #{model_forward.1} parent=1 // pred_region
      %68 = dma.done [#allocation3], 128
    $region17: #{model_forward.1} parent=1 // pred_fallthru
      _
    %69 = vsyncpa [#allocation3], 1

</llo_original>
